<compile_context>
chip_gen: v7x
topology: tpu7x:2x2x1
jax: 0.10.0
libtpu: 0.0.40
codegen_flags: <defaults>
</compile_context>

<pallas_src>
from functools import partial

import jax
import jax.numpy as jnp
from jax.experimental import pallas as pl
from jax.experimental.pallas import tpu as pltpu

HIDDEN = 128
LANE = 128


def _round_up(x, m):
    return (x + m - 1) // m * m


def _choose_tile_m(batch):
    """Pick (tile_m, m_pad) with tile_m | m_pad, tile_m % 8 == 0."""
    m8 = _round_up(batch, 8)
    if m8 <= 2048:
        # Act/learn-sized batches: one tile, one grid step (overhead-minimal).
        return m8, m8
    # Large batches: up to 8192-row tiles, but always >= 2 grid steps so DMA /
    # compute overlap and v7x megacore sharding both engage.
    tile = min(8192, _round_up(pl.cdiv(m8, 2), 8))
    m_pad = _round_up(m8, tile)
    return tile, m_pad


def dqn_kernel(x_ref, w1_ref, b1_ref, w2_ref, b2_ref, w3_ref, b3_ref, o_ref):
    """Fused forward: relu(relu(x@W1+b1)@W2+b2)@W3+b3 for one batch tile."""
    x = x_ref[...]  # f32 (TILE_M, K_PAD)

    h1 = jnp.dot(x.astype(jnp.bfloat16), w1_ref[...],
                 preferred_element_type=jnp.float32) + b1_ref[...]
    h1 = jnp.maximum(h1, 0.0)

    h2 = jnp.dot(h1.astype(jnp.bfloat16), w2_ref[...],
                 preferred_element_type=jnp.float32) + b2_ref[...]
    h2 = jnp.maximum(h2, 0.0)

    q = jnp.dot(h2.astype(jnp.bfloat16), w3_ref[...],
                preferred_element_type=jnp.float32) + b3_ref[...]
    o_ref[...] = q.astype(o_ref.dtype)  # lane-dense (TILE_M, 128) store


def prepare_params(w1, b1, w2, b2, w3, b3):
    """One-time parameter packing (call once, outside the per-step loop).

    Casts weights to bf16, pads W1's contraction dim to a multiple of 8 and
    W3/b3's action dim up to a lane-dense 128. Zero padding never changes the
    math; padded columns are sliced off in the wrapper.
    """
    n_obs = w1.shape[0]
    n_actions = w3.shape[1]
    k_pad = _round_up(n_obs, 8)
    n_pad = _round_up(n_actions, LANE)

    w1_p = jnp.zeros((k_pad, HIDDEN), jnp.bfloat16).at[:n_obs, :].set(
        w1.astype(jnp.bfloat16))
    w2_b = w2.astype(jnp.bfloat16)
    w3_p = jnp.zeros((HIDDEN, n_pad), jnp.bfloat16).at[:, :n_actions].set(
        w3.astype(jnp.bfloat16))
    b1_f = b1.reshape(1, HIDDEN).astype(jnp.float32)
    b2_f = b2.reshape(1, HIDDEN).astype(jnp.float32)
    b3_p = jnp.zeros((1, n_pad), jnp.float32).at[:, :n_actions].set(
        b3.reshape(1, -1).astype(jnp.float32))
    return w1_p, b1_f, w2_b, b2_f, w3_p, b3_p


@partial(jax.jit, static_argnames=("n_actions",))
def dqn_forward(x, w1_p, b1_f, w2_b, b2_f, w3_p, b3_p, *, n_actions):
    # NOTE: each distinct batch size triggers a fresh trace/compile; bucket
    # batch sizes in a real act/learn loop to avoid recompiles.
    batch, n_obs = x.shape
    k_pad = w1_p.shape[0]
    n_pad = w3_p.shape[1]
    tile_m, m_pad = _choose_tile_m(batch)

    xf = x.astype(jnp.float32)
    if (m_pad != batch) or (k_pad != n_obs):
        xf = jnp.pad(xf, ((0, m_pad - batch), (0, k_pad - n_obs)))

    grid = (m_pad // tile_m,)

    def const(shape):
        # Weights / biases: same block every grid step -> stay VMEM-resident.
        return pl.BlockSpec(shape, lambda i: (0, 0))

    flops = 2 * m_pad * (k_pad * HIDDEN + HIDDEN * HIDDEN + HIDDEN * n_pad)
    bytes_accessed = (xf.size * 4 + m_pad * n_pad * 4
                      + (w1_p.size + w2_b.size + w3_p.size) * 2
                      + (b1_f.size + b2_f.size + b3_p.size) * 4)

    out = pl.pallas_call(
        dqn_kernel,
        out_shape=jax.ShapeDtypeStruct((m_pad, n_pad), jnp.float32),
        grid=grid,
        in_specs=[
            pl.BlockSpec((tile_m, k_pad), lambda i: (i, 0)),   # x: tiled over batch
            const((k_pad, HIDDEN)),                            # W1
            const((1, HIDDEN)),                                # b1
            const((HIDDEN, HIDDEN)),                           # W2
            const((1, HIDDEN)),                                # b2
            const((HIDDEN, n_pad)),                            # W3 (lane-padded)
            const((1, n_pad)),                                 # b3 (lane-padded)
        ],
        out_specs=pl.BlockSpec((tile_m, n_pad), lambda i: (i, 0)),
        compiler_params=pltpu.CompilerParams(
            dimension_semantics=("parallel",)),                # v7x: both TCs
        cost_estimate=pl.CostEstimate(
            flops=flops, transcendentals=0, bytes_accessed=bytes_accessed),
    )(xf, w1_p, b1_f, w2_b, b2_f, w3_p, b3_p)

    return out[:batch, :n_actions]


def init_dqn_params(key, n_observations, n_actions, hidden=HIDDEN):
    """Deterministic init mirroring PyTorch nn.Linear default:
    U(-1/sqrt(fan_in), 1/sqrt(fan_in)) for weight and bias."""
    def linear(k, fan_in, fan_out):
        kw, kb = jax.random.split(k)
        bound = 1.0 / jnp.sqrt(jnp.float32(fan_in))
        w = jax.random.uniform(kw, (fan_in, fan_out), jnp.float32, -bound, bound)
        b = jax.random.uniform(kb, (1, fan_out), jnp.float32, -bound, bound)
        return w, b

    k1, k2, k3 = jax.random.split(key, 3)
    w1, b1 = linear(k1, n_observations, hidden)
    w2, b2 = linear(k2, hidden, hidden)
    w3, b3 = linear(k3, hidden, n_actions)
    return w1, b1, w2, b2, w3, b3


def reference_forward(x, w1, b1, w2, b2, w3, b3):
    """Pure-JAX reference with the same mixed precision (bf16 matmuls, f32 acc)."""
    def mm(a, w):
        return jnp.dot(a.astype(jnp.bfloat16), w.astype(jnp.bfloat16),
                       preferred_element_type=jnp.float32)
    h1 = jnp.maximum(mm(x, w1) + b1, 0.0)
    h2 = jnp.maximum(mm(h1, w2) + b2, 0.0)
    return mm(h2, w3) + b3


if __name__ == "__main__":
    # Small CartPole-like setup: n_observations=4, n_actions=2, batch=32.
    batch, n_observations, n_actions = 32, 4, 2

    key = jax.random.PRNGKey(0)
    kx, kp, kx2 = jax.random.split(key, 3)
    x = jax.random.normal(kx, (batch, n_observations), dtype=jnp.float32)
    raw_params = init_dqn_params(kp, n_observations, n_actions)
    prepped = prepare_params(*raw_params)   # one-time prep, outside hot path

    q = dqn_forward(x, *prepped, n_actions=n_actions)
    q = jax.block_until_ready(q)
    q_ref = reference_forward(x, *raw_params)
    assert q.shape == (batch, n_actions)
    assert jnp.allclose(q, q_ref, atol=1e-2, rtol=1e-2), "mismatch vs JAX reference"

    # Exercise the multi-tile (>=2 grid steps) / megacore path with a
    # replay-buffer-sized batch (still tiny data: 4096 x 4 f32).
    x_big = jax.random.normal(kx2, (4096, n_observations), dtype=jnp.float32)
    q_big = jax.block_until_ready(dqn_forward(x_big, *prepped, n_actions=n_actions))
    q_big_ref = reference_forward(x_big, *raw_params)
    assert q_big.shape == (4096, n_actions)
    assert jnp.allclose(q_big, q_big_ref, atol=1e-2, rtol=1e-2), \
        "mismatch vs JAX reference (large batch)"

    print("KERNEL_OK")
</pallas_src>

<mosaic_0001>
module attributes {stable_mosaic.version = 11 : i64} {
  func.func @dqn_kernel(%arg0: i32, %arg1: memref<32x8xf32, #tpu.memory_space<vmem>>, %arg2: memref<8x128xbf16, #tpu.memory_space<vmem>>, %arg3: memref<1x128xf32, #tpu.memory_space<vmem>>, %arg4: memref<128x128xbf16, #tpu.memory_space<vmem>>, %arg5: memref<1x128xf32, #tpu.memory_space<vmem>>, %arg6: memref<128x128xbf16, #tpu.memory_space<vmem>>, %arg7: memref<1x128xf32, #tpu.memory_space<vmem>>, %arg8: memref<32x128xf32, #tpu.memory_space<vmem>>) attributes {dimension_semantics = [#tpu.dimension_semantics<parallel>], iteration_bounds = array<i64: 1>, scalar_prefetch = 0 : i64, scratch_operands = 0 : i64, tpu.core_type = #tpu.core_type<tc>, window_params = [{transform_indices = @transform_0, window_bounds = array<i64: 32, 8>}, {pipeline_mode = #tpu.pipeline_mode<synchronous>, transform_indices = @transform_1, window_bounds = array<i64: 8, 128>}, {pipeline_mode = #tpu.pipeline_mode<synchronous>, transform_indices = @transform_2, window_bounds = array<i64: 1, 128>}, {pipeline_mode = #tpu.pipeline_mode<synchronous>, transform_indices = @transform_3, window_bounds = array<i64: 128, 128>}, {pipeline_mode = #tpu.pipeline_mode<synchronous>, transform_indices = @transform_4, window_bounds = array<i64: 1, 128>}, {pipeline_mode = #tpu.pipeline_mode<synchronous>, transform_indices = @transform_5, window_bounds = array<i64: 128, 128>}, {pipeline_mode = #tpu.pipeline_mode<synchronous>, transform_indices = @transform_6, window_bounds = array<i64: 1, 128>}, {transform_indices = @transform_7, window_bounds = array<i64: 32, 128>}]} {
    %c0 = arith.constant 0 : index
    %c0_0 = arith.constant 0 : index
    %0 = vector.load %arg1[%c0, %c0_0] : memref<32x8xf32, #tpu.memory_space<vmem>>, vector<32x8xf32>
    %1 = arith.truncf %0 : vector<32x8xf32> to vector<32x8xbf16>
    %c0_1 = arith.constant 0 : index
    %c0_2 = arith.constant 0 : index
    %2 = vector.load %arg2[%c0_1, %c0_2] : memref<8x128xbf16, #tpu.memory_space<vmem>>, vector<8x128xbf16>
    %cst = arith.constant dense<0.000000e+00> : vector<32x128xf32>
    %3 = tpu.matmul %1, %2, %cst {dimension_numbers = #tpu.dot_dimension_numbers<[1], [0], [0], [1], [0, 0, 1, 1], [], []>} : vector<32x8xbf16>, vector<8x128xbf16>, vector<32x128xf32> -> vector<32x128xf32>
    %c0_3 = arith.constant 0 : index
    %c0_4 = arith.constant 0 : index
    %4 = vector.load %arg3[%c0_3, %c0_4] : memref<1x128xf32, #tpu.memory_space<vmem>>, vector<1x128xf32>
    %5 = vector.broadcast %4 : vector<1x128xf32> to vector<32x128xf32>
    %6 = arith.addf %3, %5 : vector<32x128xf32>
    %cst_5 = arith.constant 0.000000e+00 : f32
    %7 = vector.broadcast %cst_5 : f32 to vector<32x128xf32>
    %8 = arith.maximumf %6, %7 : vector<32x128xf32>
    %9 = arith.truncf %8 : vector<32x128xf32> to vector<32x128xbf16>
    %c0_6 = arith.constant 0 : index
    %c0_7 = arith.constant 0 : index
    %10 = vector.load %arg4[%c0_6, %c0_7] : memref<128x128xbf16, #tpu.memory_space<vmem>>, vector<128x128xbf16>
    %cst_8 = arith.constant dense<0.000000e+00> : vector<32x128xf32>
    %11 = tpu.matmul %9, %10, %cst_8 {dimension_numbers = #tpu.dot_dimension_numbers<[1], [0], [0], [1], [0, 0, 1, 1], [], []>} : vector<32x128xbf16>, vector<128x128xbf16>, vector<32x128xf32> -> vector<32x128xf32>
    %c0_9 = arith.constant 0 : index
    %c0_10 = arith.constant 0 : index
    %12 = vector.load %arg5[%c0_9, %c0_10] : memref<1x128xf32, #tpu.memory_space<vmem>>, vector<1x128xf32>
    %13 = vector.broadcast %12 : vector<1x128xf32> to vector<32x128xf32>
    %14 = arith.addf %11, %13 : vector<32x128xf32>
    %cst_11 = arith.constant 0.000000e+00 : f32
    %15 = vector.broadcast %cst_11 : f32 to vector<32x128xf32>
    %16 = arith.maximumf %14, %15 : vector<32x128xf32>
    %17 = arith.truncf %16 : vector<32x128xf32> to vector<32x128xbf16>
    %c0_12 = arith.constant 0 : index
    %c0_13 = arith.constant 0 : index
    %18 = vector.load %arg6[%c0_12, %c0_13] : memref<128x128xbf16, #tpu.memory_space<vmem>>, vector<128x128xbf16>
    %cst_14 = arith.constant dense<0.000000e+00> : vector<32x128xf32>
    %19 = tpu.matmul %17, %18, %cst_14 {dimension_numbers = #tpu.dot_dimension_numbers<[1], [0], [0], [1], [0, 0, 1, 1], [], []>} : vector<32x128xbf16>, vector<128x128xbf16>, vector<32x128xf32> -> vector<32x128xf32>
    %c0_15 = arith.constant 0 : index
    %c0_16 = arith.constant 0 : index
    %20 = vector.load %arg7[%c0_15, %c0_16] : memref<1x128xf32, #tpu.memory_space<vmem>>, vector<1x128xf32>
    %21 = vector.broadcast %20 : vector<1x128xf32> to vector<32x128xf32>
    %22 = arith.addf %19, %21 : vector<32x128xf32>
    %c0_17 = arith.constant 0 : index
    %c0_18 = arith.constant 0 : index
    %23 = vector.load %arg8[%c0_17, %c0_18] : memref<32x128xf32, #tpu.memory_space<vmem>>, vector<32x128xf32>
    tpu.vector_store %arg8[%c0_17, %c0_18], %22 {strides = array<i32>} : memref<32x128xf32, #tpu.memory_space<vmem>>, vector<32x128xf32>,
    return
  }
  func.func @transform_0(%arg0: i32) -> (i32, i32) {
    %c0_i32 = arith.constant 0 : i32
    %c0_i32_0 = arith.constant 0 : i32
    return %arg0, %c0_i32 : i32, i32
  }
  func.func @transform_1(%arg0: i32) -> (i32, i32) {
    %c0_i32 = arith.constant 0 : i32
    %c0_i32_0 = arith.constant 0 : i32
    %c0_i32_1 = arith.constant 0 : i32
    return %c0_i32, %c0_i32_0 : i32, i32
  }
  func.func @transform_2(%arg0: i32) -> (i32, i32) {
    %c0_i32 = arith.constant 0 : i32
    %c0_i32_0 = arith.constant 0 : i32
    %c0_i32_1 = arith.constant 0 : i32
    return %c0_i32, %c0_i32_0 : i32, i32
  }
  func.func @transform_3(%arg0: i32) -> (i32, i32) {
    %c0_i32 = arith.constant 0 : i32
    %c0_i32_0 = arith.constant 0 : i32
    %c0_i32_1 = arith.constant 0 : i32
    return %c0_i32, %c0_i32_0 : i32, i32
  }
  func.func @transform_4(%arg0: i32) -> (i32, i32) {
    %c0_i32 = arith.constant 0 : i32
    %c0_i32_0 = arith.constant 0 : i32
    %c0_i32_1 = arith.constant 0 : i32
    return %c0_i32, %c0_i32_0 : i32, i32
  }
  func.func @transform_5(%arg0: i32) -> (i32, i32) {
    %c0_i32 = arith.constant 0 : i32
    %c0_i32_0 = arith.constant 0 : i32
    %c0_i32_1 = arith.constant 0 : i32
    return %c0_i32, %c0_i32_0 : i32, i32
  }
  func.func @transform_6(%arg0: i32) -> (i32, i32) {
    %c0_i32 = arith.constant 0 : i32
    %c0_i32_0 = arith.constant 0 : i32
    %c0_i32_1 = arith.constant 0 : i32
    return %c0_i32, %c0_i32_0 : i32, i32
  }
  func.func @transform_7(%arg0: i32) -> (i32, i32) {
    %c0_i32 = arith.constant 0 : i32
    %c0_i32_0 = arith.constant 0 : i32
    return %arg0, %c0_i32 : i32, i32
  }
}

</mosaic_0001>

<llo_original>
// kernel: dqn_forward.1
$region0: #{dqn_forward.1}
  #allocation0 [shape = 'u32[]', space=smem, size = 0x4, offset = 0x4, fixed_abs, tag = 'smem constant byte address 0x4 - core index']
  #allocation1 [shape = 'u32[144,128]{1,0:T(1,128)}', space=vmem, size = 0x12000, scoped, tag = 'internal scratch']
  %s0 = inlined_call_operand.vmem [shape: f32[32,8], index: 0, kind: input, shape index: {}]
  %s1 = inlined_call_operand.vmem [shape: bf16[8,128], index: 1, kind: input, shape index: {}]
  %s2 = inlined_call_operand.vmem [shape: f32[1,128], index: 2, kind: input, shape index: {}]
  %s3 = inlined_call_operand.vmem [shape: bf16[128,128], index: 3, kind: input, shape index: {}]
  %s4 = inlined_call_operand.vmem [shape: f32[1,128], index: 4, kind: input, shape index: {}]
  %s5 = inlined_call_operand.hbm [shape: bf16[128,128], index: 5, kind: input, shape index: {}]
  %s6 = inlined_call_operand.vmem [shape: f32[1,128], index: 6, kind: input, shape index: {}]
  %s7 = inlined_call_operand.vmem [shape: f32[32,128], index: 7, kind: output, shape index: {}]
  %s8 = sld [smem:[#allocation0]]
  $region42: #{dqn_forward.1} parent=0
    _
  %s10 = ssub.s32 1, %s8
  %s11 = scalar_select 0, %s10, %s8
  $region1: #{dqn_forward.1} parent=0
    #allocation2 [shape = 'u8[32768]{0}', space=vmem, size = 0x8000, scoped, tag = 'input window, operand 5, single buffered']
    #allocation3 [shape = 's32[1]{0}', space=sflag, size = 0x4, scoped, tag = 'scoped memory for dqn_forward.1']
    %12 = vsyncpa [#allocation3], 0
    // Predicated region
    $region2: #{dqn_forward.1} parent=1 // pred_check
      _
    $region3: #{dqn_forward.1} parent=1 // pred_check_branch
      %14 = sbr.rel (0) target = $region5
    $region4: #{dqn_forward.1} parent=1 // pred_region
      _
    $region5: #{dqn_forward.1} parent=1 // pred_fallthru
      _
    // Predicated region
    $region6: #{dqn_forward.1} parent=1 // pred_check
      _
    $region7: #{dqn_forward.1} parent=1 // pred_check_branch
      %16 = sbr.rel (0) target = $region9
    $region8: #{dqn_forward.1} parent=1 // pred_region
      _
    $region9: #{dqn_forward.1} parent=1 // pred_fallthru
      _
    // Predicated region
    $region10: #{dqn_forward.1} parent=1 // pred_check
      _
    $region11: #{dqn_forward.1} parent=1 // pred_check_branch
      %18 = sbr.rel (0) target = $region13
    $region12: #{dqn_forward.1} parent=1 // pred_region
      _
    $region13: #{dqn_forward.1} parent=1 // pred_fallthru
      _
    // Predicated region
    $region14: #{dqn_forward.1} parent=1 // pred_check
      _
    $region15: #{dqn_forward.1} parent=1 // pred_check_branch
      %20 = sbr.rel (0) target = $region17
    $region16: #{dqn_forward.1} parent=1 // pred_region
      _
    $region17: #{dqn_forward.1} parent=1 // pred_fallthru
      _
    // Predicated region
    $region18: #{dqn_forward.1} parent=1 // pred_check
      _
    $region19: #{dqn_forward.1} parent=1 // pred_check_branch
      %22 = sbr.rel (0) target = $region21
    $region20: #{dqn_forward.1} parent=1 // pred_region
      _
    $region21: #{dqn_forward.1} parent=1 // pred_fallthru
      _
    // Predicated region
    $region22: #{dqn_forward.1} parent=1 // pred_check
      _
    $region23: #{dqn_forward.1} parent=1 // pred_check_branch
      %24 = sbr.rel (0) target = $region25
    $region24: #{dqn_forward.1} parent=1 // pred_region
      %s26 = ssub.s32 1024, 1024
      %27 = vsyncadd [#allocation3], %s26
      %s28 = sshll.u32 [#allocation2], 4
      %s29 = int_to_ptr.vmem [resolvable:$true] %s28
      %34 = dma.hbm_to_vmem [thread:$0]  %s5, 1024, %s29, [#allocation3], 64, 64, 4
    $region25: #{dqn_forward.1} parent=1 // pred_fallthru
      _
    // Predicated region
    $region26: #{dqn_forward.1} parent=1 // pred_check
      _
    $region27: #{dqn_forward.1} parent=1 // pred_check_branch
      %36 = sbr.rel (0) target = $region29
    $region28: #{dqn_forward.1} parent=1 // pred_region
      _
    $region29: #{dqn_forward.1} parent=1 // pred_fallthru
      _
    // Predicated region
    $region30: #{dqn_forward.1} parent=1 // pred_check
      _
    $region31: #{dqn_forward.1} parent=1 // pred_check_branch
      %38 = sbr.rel (0) target = $region33
    $region32: #{dqn_forward.1} parent=1 // pred_region
      %39 = dma.done [#allocation3], 1024
    $region33: #{dqn_forward.1} parent=1 // pred_fallthru
      _
    %v41 = vld [vmem:[%s0] sm:$0xff]
    %v42 = vld [vmem:[%s0 + $0x8] sm:$0xff]
    %v43 = vld [vmem:[%s0 + $0x10] sm:$0xff]
    %v44 = vld [vmem:[%s0 + $0x18] sm:$0xff]
    %v45 = vpack.c.bf16 %v42, %v41
    %v46 = vpack.c.bf16 %v44, %v43
    %v47 = vld [vmem:[%s1] sm:$0xf]
    %v48 = vld [vmem:[%s2] sm:$0x1]
    %v50 = vlaneseq
    %v51 = vshrl.u32 %v50, 7
    %v52 = vsub.s32 0, %v51
    %v53 = vrot.slane %v48, %v52
    %vm55 = vcmask 64512
    %v57 = vsel %vm55, %v45, 0
    %v60 = vsel %vm55, %v46, 0
    %vm62 = vcmask 1043456
    %v64 = vsel %vm62, %v47, 0
    %66 = vmatprep.subr.bf16.mxu0 0
    %67 = vmatpush1.bf16.msra.mxu0 %v64
    %68 = vmatprep.subr.bf16.mxu0 0
    %69 = vmatpush1.bf16.msra.mxu0 0
    %70 = vmatprep.subr.bf16.mxu0 0
    %71 = vmatpush1.bf16.msra.mxu0 0
    %72 = vmatprep.subr.bf16.mxu0 0
    %73 = vmatpush1.bf16.msra.mxu0 0
    %74 = vmatprep.subr.bf16.mxu0 0
    %75 = vmatpush1.bf16.msra.mxu0 0
    %76 = vmatprep.subr.bf16.mxu0 0
    %77 = vmatpush1.bf16.msra.mxu0 0
    %78 = vmatprep.subr.bf16.mxu0 0
    %79 = vmatpush1.bf16.msra.mxu0 0
    %80 = vmatprep.subr.bf16.mxu0 0
    %81 = vmatpush1.bf16.msra.mxu0 0
    %82 = vmatprep.subr.bf16.mxu0 0
    %83 = vmatpush1.bf16.msra.mxu0 0
    %84 = vmatprep.subr.bf16.mxu0 0
    %85 = vmatpush1.bf16.msra.mxu0 0
    %86 = vmatprep.subr.bf16.mxu0 0
    %87 = vmatpush1.bf16.msra.mxu0 0
    %88 = vmatprep.subr.bf16.mxu0 0
    %89 = vmatpush1.bf16.msra.mxu0 0
    %90 = vmatprep.subr.bf16.mxu0 0
    %91 = vmatpush1.bf16.msra.mxu0 0
    %92 = vmatprep.subr.bf16.mxu0 0
    %93 = vmatpush1.bf16.msra.mxu0 0
    %94 = vmatprep.subr.bf16.mxu0 0
    %95 = vmatpush1.bf16.msra.mxu0 0
    %96 = vmatprep.subr.bf16.mxu0 0
    %97 = vmatpush1.bf16.msra.mxu0 0
    %98 = vmatprep.mubr.bf16.mxu0 0
    %99 = vmatmul.mubr.bf16.gmra.mrb[0].mxu0 %v57
    %v100 = vpop.f32.mrb[0].mxu0
    %v101 = vadd.f32 %v53, %v100
    %v102 = vpop.f32.mrb[0].mxu0
    %v103 = vpop.f32.mrb[0].mxu0
    %v104 = vadd.f32 %v53, %v103
    %v105 = vpop.f32.mrb[0].mxu0
    %106 = vmatprep.mubr.bf16.mxu0 0
    %107 = vmatmul.mubr.bf16.gmra.mrb[0].mxu0 %v60
    %v108 = vpop.f32.mrb[0].mxu0
    %v109 = vadd.f32 %v53, %v108
    %v110 = vpop.f32.mrb[0].mxu0
    %v111 = vpop.f32.mrb[0].mxu0
    %v112 = vadd.f32 %v53, %v111
    %v113 = vpop.f32.mrb[0].mxu0
    %114 = vdwg.mxu0
    %v115 = vmax.f32 %v101, 0.0
    %v116 = vmax.f32 %v104, 0.0
    %v117 = vmax.f32 %v109, 0.0
    %v118 = vmax.f32 %v112, 0.0
    %v119 = vpack.c.bf16 %v116, %v115
    %v120 = vpack.c.bf16 %v118, %v117
    %v121 = vld [vmem:[%s3] sm:$0xf]
    %v122 = vld [vmem:[%s3 + $0x4] sm:$0xf]
    %v123 = vld [vmem:[%s3 + $0x8] sm:$0xf]
    %v124 = vld [vmem:[%s3 + $0xc] sm:$0xf]
    %v125 = vld [vmem:[%s3 + $0x10] sm:$0xf]
    %v126 = vld [vmem:[%s3 + $0x14] sm:$0xf]
    %v127 = vld [vmem:[%s3 + $0x18] sm:$0xf]
    %v128 = vld [vmem:[%s3 + $0x1c] sm:$0xf]
    %v129 = vld [vmem:[%s3 + $0x20] sm:$0xf]
    %v130 = vld [vmem:[%s3 + $0x24] sm:$0xf]
    %v131 = vld [vmem:[%s3 + $0x28] sm:$0xf]
    %v132 = vld [vmem:[%s3 + $0x2c] sm:$0xf]
    %v133 = vld [vmem:[%s3 + $0x30] sm:$0xf]
    %v134 = vld [vmem:[%s3 + $0x34] sm:$0xf]
    %v135 = vld [vmem:[%s3 + $0x38] sm:$0xf]
    %v136 = vld [vmem:[%s3 + $0x3c] sm:$0xf]
    %v137 = vld [vmem:[%s4] sm:$0x1]
    %v139 = vlaneseq
    %v140 = vshrl.u32 %v139, 7
    %v141 = vsub.s32 0, %v140
    %v142 = vrot.slane %v137, %v141
    %v160 = vunpack.c.l.b16 %v121
    %v161 = vunpack.c.l.b16 %v122
    %v162 = vunpack.c.l.b16 %v123
    %v163 = vunpack.c.l.b16 %v124
    %v164 = vunpack.c.l.b16 %v125
    %v165 = vunpack.c.l.b16 %v126
    %v166 = vunpack.c.l.b16 %v127
    %v167 = vunpack.c.l.b16 %v128
    %v168 = vunpack.c.l.b16 %v129
    %v169 = vunpack.c.l.b16 %v130
    %v170 = vunpack.c.l.b16 %v131
    %v171 = vunpack.c.l.b16 %v132
    %v172 = vunpack.c.l.b16 %v133
    %v173 = vunpack.c.l.b16 %v134
    %v174 = vunpack.c.l.b16 %v135
    %v175 = vunpack.c.l.b16 %v136
    %v176 = vpack.c.b16 %v161, %v160
    %v177 = vpack.c.b16 %v163, %v162
    %v178 = vpack.c.b16 %v165, %v164
    %v179 = vpack.c.b16 %v167, %v166
    %v180 = vpack.c.b16 %v169, %v168
    %v181 = vpack.c.b16 %v171, %v170
    %v182 = vpack.c.b16 %v173, %v172
    %v183 = vpack.c.b16 %v175, %v174
    %192 = vmatprep.subr.bf16.mxu0 0
    %193 = vmatpush1.bf16.msra.mxu0 %v176
    %194 = vmatprep.subr.bf16.mxu0 0
    %195 = vmatpush1.bf16.msra.mxu0 %v177
    %196 = vmatprep.subr.bf16.mxu0 0
    %197 = vmatpush1.bf16.msra.mxu0 %v178
    %198 = vmatprep.subr.bf16.mxu0 0
    %199 = vmatpush1.bf16.msra.mxu0 %v179
    %200 = vmatprep.subr.bf16.mxu0 0
    %201 = vmatpush1.bf16.msra.mxu0 %v180
    %202 = vmatprep.subr.bf16.mxu0 0
    %203 = vmatpush1.bf16.msra.mxu0 %v181
    %204 = vmatprep.subr.bf16.mxu0 0
    %205 = vmatpush1.bf16.msra.mxu0 %v182
    %206 = vmatprep.subr.bf16.mxu0 0
    %207 = vmatpush1.bf16.msra.mxu0 %v183
    %208 = vmatprep.subr.bf16.mxu0 0
    %209 = vmatpush1.bf16.msra.mxu0 0
    %210 = vmatprep.subr.bf16.mxu0 0
    %211 = vmatpush1.bf16.msra.mxu0 0
    %212 = vmatprep.subr.bf16.mxu0 0
    %213 = vmatpush1.bf16.msra.mxu0 0
    %214 = vmatprep.subr.bf16.mxu0 0
    %215 = vmatpush1.bf16.msra.mxu0 0
    %216 = vmatprep.subr.bf16.mxu0 0
    %217 = vmatpush1.bf16.msra.mxu0 0
    %218 = vmatprep.subr.bf16.mxu0 0
    %219 = vmatpush1.bf16.msra.mxu0 0
    %220 = vmatprep.subr.bf16.mxu0 0
    %221 = vmatpush1.bf16.msra.mxu0 0
    %222 = vmatprep.subr.bf16.mxu0 0
    %223 = vmatpush1.bf16.msra.mxu0 0
    %224 = vmatprep.mubr.bf16.mxu0 0
    %225 = vmatmul.mubr.bf16.gmra.mrb[0].mxu0 %v119
    %v226 = vpop.f32.mrb[0].mxu0
    %v227 = vadd.f32 %v142, %v226
    %v228 = vpop.f32.mrb[0].mxu0
    %v229 = vpop.f32.mrb[0].mxu0
    %v230 = vadd.f32 %v142, %v229
    %v231 = vpop.f32.mrb[0].mxu0
    %232 = vmatprep.mubr.bf16.mxu0 0
    %233 = vmatmul.mubr.bf16.gmra.mrb[0].mxu0 %v120
    %v234 = vpop.f32.mrb[0].mxu0
    %v235 = vadd.f32 %v142, %v234
    %v236 = vpop.f32.mrb[0].mxu0
    %v237 = vpop.f32.mrb[0].mxu0
    %v238 = vadd.f32 %v142, %v237
    %v239 = vpop.f32.mrb[0].mxu0
    %240 = vdwg.mxu0
    %v241 = vmax.f32 %v227, 0.0
    %v242 = vmax.f32 %v230, 0.0
    %v243 = vmax.f32 %v235, 0.0
    %v244 = vmax.f32 %v238, 0.0
    %v245 = vpack.c.bf16 %v242, %v241
    %v246 = vpack.c.bf16 %v244, %v243
    %v247 = vld [vmem:[#allocation2] sm:$0xf]
    %v248 = vld [vmem:[#allocation2 + $0x4] sm:$0xf]
    %v249 = vld [vmem:[#allocation2 + $0x8] sm:$0xf]
    %v250 = vld [vmem:[#allocation2 + $0xc] sm:$0xf]
    %v251 = vld [vmem:[#allocation2 + $0x10] sm:$0xf]
    %v252 = vld [vmem:[#allocation2 + $0x14] sm:$0xf]
    %v253 = vld [vmem:[#allocation2 + $0x18] sm:$0xf]
    %v254 = vld [vmem:[#allocation2 + $0x1c] sm:$0xf]
    %v255 = vld [vmem:[#allocation2 + $0x20] sm:$0xf]
    %v256 = vld [vmem:[#allocation2 + $0x24] sm:$0xf]
    %v257 = vld [vmem:[#allocation2 + $0x28] sm:$0xf]
    %v258 = vld [vmem:[#allocation2 + $0x2c] sm:$0xf]
    %v259 = vld [vmem:[#allocation2 + $0x30] sm:$0xf]
    %v260 = vld [vmem:[#allocation2 + $0x34] sm:$0xf]
    %v261 = vld [vmem:[#allocation2 + $0x38] sm:$0xf]
    %v262 = vld [vmem:[#allocation2 + $0x3c] sm:$0xf]
    %v263 = vld [vmem:[%s6] sm:$0x1]
    %v265 = vlaneseq
    %v266 = vshrl.u32 %v265, 7
    %v267 = vsub.s32 0, %v266
    %v268 = vrot.slane %v263, %v267
    %v286 = vunpack.c.l.b16 %v247
    %v287 = vunpack.c.l.b16 %v248
    %v288 = vunpack.c.l.b16 %v249
    %v289 = vunpack.c.l.b16 %v250
    %v290 = vunpack.c.l.b16 %v251
    %v291 = vunpack.c.l.b16 %v252
    %v292 = vunpack.c.l.b16 %v253
    %v293 = vunpack.c.l.b16 %v254
    %v294 = vunpack.c.l.b16 %v255
    %v295 = vunpack.c.l.b16 %v256
    %v296 = vunpack.c.l.b16 %v257
    %v297 = vunpack.c.l.b16 %v258
    %v298 = vunpack.c.l.b16 %v259
    %v299 = vunpack.c.l.b16 %v260
    %v300 = vunpack.c.l.b16 %v261
    %v301 = vunpack.c.l.b16 %v262
    %v302 = vpack.c.b16 %v287, %v286
    %v303 = vpack.c.b16 %v289, %v288
    %v304 = vpack.c.b16 %v291, %v290
    %v305 = vpack.c.b16 %v293, %v292
    %v306 = vpack.c.b16 %v295, %v294
    %v307 = vpack.c.b16 %v297, %v296
    %v308 = vpack.c.b16 %v299, %v298
    %v309 = vpack.c.b16 %v301, %v300
    %318 = vmatprep.subr.bf16.mxu0 0
    %319 = vmatpush1.bf16.msra.mxu0 %v302
    %320 = vmatprep.subr.bf16.mxu0 0
    %321 = vmatpush1.bf16.msra.mxu0 %v303
    %322 = vmatprep.subr.bf16.mxu0 0
    %323 = vmatpush1.bf16.msra.mxu0 %v304
    %324 = vmatprep.subr.bf16.mxu0 0
    %325 = vmatpush1.bf16.msra.mxu0 %v305
    %326 = vmatprep.subr.bf16.mxu0 0
    %327 = vmatpush1.bf16.msra.mxu0 %v306
    %328 = vmatprep.subr.bf16.mxu0 0
    %329 = vmatpush1.bf16.msra.mxu0 %v307
    %330 = vmatprep.subr.bf16.mxu0 0
    %331 = vmatpush1.bf16.msra.mxu0 %v308
    %332 = vmatprep.subr.bf16.mxu0 0
    %333 = vmatpush1.bf16.msra.mxu0 %v309
    %334 = vmatprep.subr.bf16.mxu0 0
    %335 = vmatpush1.bf16.msra.mxu0 0
    %336 = vmatprep.subr.bf16.mxu0 0
    %337 = vmatpush1.bf16.msra.mxu0 0
    %338 = vmatprep.subr.bf16.mxu0 0
    %339 = vmatpush1.bf16.msra.mxu0 0
    %340 = vmatprep.subr.bf16.mxu0 0
    %341 = vmatpush1.bf16.msra.mxu0 0
    %342 = vmatprep.subr.bf16.mxu0 0
    %343 = vmatpush1.bf16.msra.mxu0 0
    %344 = vmatprep.subr.bf16.mxu0 0
    %345 = vmatpush1.bf16.msra.mxu0 0
    %346 = vmatprep.subr.bf16.mxu0 0
    %347 = vmatpush1.bf16.msra.mxu0 0
    %348 = vmatprep.subr.bf16.mxu0 0
    %349 = vmatpush1.bf16.msra.mxu0 0
    %350 = vmatprep.mubr.bf16.mxu0 0
    %351 = vmatmul.mubr.bf16.gmra.mrb[0].mxu0 %v245
    %v352 = vpop.f32.mrb[0].mxu0
    %v353 = vadd.f32 %v268, %v352
    %v354 = vpop.f32.mrb[0].mxu0
    %v355 = vpop.f32.mrb[0].mxu0
    %v356 = vadd.f32 %v268, %v355
    %v357 = vpop.f32.mrb[0].mxu0
    %358 = vmatprep.mubr.bf16.mxu0 0
    %359 = vmatmul.mubr.bf16.gmra.mrb[0].mxu0 %v246
    %v360 = vpop.f32.mrb[0].mxu0
    %v361 = vadd.f32 %v268, %v360
    %v362 = vpop.f32.mrb[0].mxu0
    %v363 = vpop.f32.mrb[0].mxu0
    %v364 = vadd.f32 %v268, %v363
    %v365 = vpop.f32.mrb[0].mxu0
    %366 = vdwg.mxu0
    %367 = vst [vmem:[%s7] sm:$0xff] %v353
    %368 = vst [vmem:[%s7 + $0x8] sm:$0xff] %v356
    %369 = vst [vmem:[%s7 + $0x10] sm:$0xff] %v361
    %370 = vst [vmem:[%s7 + $0x18] sm:$0xff] %v364
    // Predicated region
    $region34: #{dqn_forward.1} parent=1 // pred_check
      _
    $region35: #{dqn_forward.1} parent=1 // pred_check_branch
      %372 = sbr.rel (0) target = $region37
    $region36: #{dqn_forward.1} parent=1 // pred_region
      _
    $region37: #{dqn_forward.1} parent=1 // pred_fallthru
      _
    // Predicated region
    $region38: #{dqn_forward.1} parent=1 // pred_check
      _
    $region39: #{dqn_forward.1} parent=1 // pred_check_branch
      %374 = sbr.rel (0) target = $region41
    $region40: #{dqn_forward.1} parent=1 // pred_region
      _
    $region41: #{dqn_forward.1} parent=1 // pred_fallthru
      _
    %375 = vsyncpa [#allocation3], 1

</llo_original>
